<compile_context>
chip_gen: v5e
topology: v5e:2x2
jax: 0.10.0
libtpu: 0.0.40
codegen_flags: <defaults>
</compile_context>

<pallas_src>
import functools
import math

import jax
import jax.numpy as jnp
from jax import lax
from jax.experimental import pallas as pl
from jax.experimental.pallas import tpu as pltpu

_MAX_TILE_ROWS = 3072  # keeps grid-step work large without unbounded kernels


def _conv_phase_kernel(x_ref, planes_ref, o_ref, splice_ref, halo_ref, *,
                       CH, n_chunks, save_halo):
    # x_ref      : (tT, Df)          current time-tile of the input (native dtype)
    # planes_ref : (W+1, CH, Df)     per-(t%3) tap planes for one CH-row period;
    #                                [W] = bias plane (f32, DMA'd once)
    # o_ref      : (tT, Df)          output tile
    # splice_ref : (H + CH, Df)      chunk-0 [halo | rows] splice (native dtype)
    # halo_ref   : (H, Df)           causal halo carried to the next T-tile
    tT, Df = o_ref.shape
    W = planes_ref.shape[0] - 1
    H = W - 1
    t_idx = pl.program_id(1)

    # Per-phase tap/bias planes: loaded once per grid step, vreg-resident across
    # the chunk loop (no per-output plane reloads from VMEM).
    w_planes = [planes_ref[k] for k in range(W)]      # each (CH, Df) f32
    b_plane = planes_ref[W]                           # (CH, Df) f32

    # ---- chunk 0: needs the causal halo splice -------------------------------
    # NOTE: the halo carry requires the t grid axis to stay the innermost,
    # strictly in-order ("arbitrary") axis; do not mark it "parallel".
    @pl.when(t_idx == 0)
    def _():
        splice_ref[pl.ds(0, H), :] = jnp.zeros((H, Df), splice_ref.dtype)

    @pl.when(t_idx != 0)
    def _():
        splice_ref[pl.ds(0, H), :] = halo_ref[...]

    splice_ref[pl.ds(H, CH), :] = x_ref[pl.ds(0, CH), :]

    # Carry the causal halo (last H input rows of this tile) to the next tile.
    if save_halo:
        halo_ref[...] = x_ref[pl.ds(tT - H, H), :]

    acc0 = b_plane
    for k in range(W):                                # small static tap loop
        acc0 = acc0 + w_planes[k] * splice_ref[pl.ds(k, CH), :].astype(jnp.float32)
    o_ref[pl.ds(0, CH), :] = acc0.astype(o_ref.dtype)

    # ---- chunks 1..n-1: every tap lies inside the current tile ---------------
    if n_chunks > 1:
        def chunk_body(c, carry):
            base = pl.multiple_of(c * CH, 8)          # CH == 24 here (mult. of 8)
            acc = b_plane
            for k in range(W):
                xk = x_ref[pl.ds(base + k - H, CH), :].astype(jnp.float32)
                acc = acc + w_planes[k] * xk
            o_ref[pl.ds(base, CH), :] = acc.astype(o_ref.dtype)
            return carry

        trips = n_chunks - 1
        lax.fori_loop(1, n_chunks, chunk_body, 0, unroll=True if trips <= 32 else False)


def _vmem_budget():
    """(per-tile VMEM budget, vmem_limit_bytes) — generation aware."""
    cap = None
    try:
        cap = int(getattr(pltpu.get_tpu_info(), "vmem_capacity_bytes", 0)) or None
    except Exception:
        cap = None
    if cap is not None and cap > 64 * 1024 * 1024:      # v5e / v6e class (128 MiB)
        return 24 * 1024 * 1024, 64 * 1024 * 1024
    return 16 * 1024 * 1024, 48 * 1024 * 1024           # v7x class / unknown


def _choose_tile(T, Df, itemsize, tile_budget):
    """Return (tT, T_pad). tT is a multiple of 24 (or the full padded T)."""
    per_row = 4 * itemsize * Df + 128                    # dbl-buffered in + out rows
    cap = max(24, (min(_MAX_TILE_ROWS, tile_budget // max(per_row, 1)) // 24) * 24)
    if T <= cap:
        return T, T
    t = cap
    while t >= 24:                                       # largest mult-of-24 divisor
        if T % t == 0:
            return t, T
        t -= 24
    # No divisor: pad T (causal conv -> padded tail rows never affect real rows).
    tT = cap
    return tT, ((T + tT - 1) // tT) * tT


def convolution_forward(x, weights, biases, window_size, *, t_tile=None):
    """x: (B, T, D); weights: (3, D, W) (stacked depthwise Conv1d weights with the
    size-1 input-channel dim squeezed); biases: (3, D). Returns (B, T, D)."""
    B, T, D = x.shape
    W = int(window_size)
    assert T % 3 == 0, "rtg/obs/act interleave requires seq length divisible by 3"
    assert weights.shape == (3, D, W) and biases.shape == (3, D)

    # Guarantee >= 2 taps so the halo scratch is non-empty (prepending zero taps
    # at the far-past end keeps causal semantics unchanged).
    W_eff = max(W, 2)
    H = W_eff - 1
    wT = jnp.transpose(weights, (0, 2, 1)).astype(jnp.float32)        # (3, W, D)
    if W_eff > W:
        wT = jnp.pad(wT, ((0, 0), (W_eff - W, 0), (0, 0)))            # (3, W_eff, D)
    bK = biases.astype(jnp.float32)                                   # (3, D)

    # Lane densification: only for very small model_dim (fold/unfold transposes
    # cost HBM passes) and capped so the folded batch keeps >= 2 rows for the
    # "parallel" batch axis (v7x megacore).
    G = 1
    if D <= 32 and 128 % D == 0:
        G = math.gcd(B, 128 // D)
        while G > 1 and (B // G) < 2:
            G //= 2
    if G > 1:
        xk = x.reshape(B // G, G, T, D).transpose(0, 2, 1, 3).reshape(B // G, T, G * D)
        wT = jnp.tile(wT, (1, 1, G))
        bK = jnp.tile(bK, (1, G))
    else:
        xk = x
    Bf, Df = xk.shape[0], xk.shape[2]

    itemsize = jnp.dtype(x.dtype).itemsize
    tile_budget, vmem_limit = _vmem_budget()
    if t_tile is None:
        tT, T_pad = _choose_tile(T, Df, itemsize, tile_budget)
    else:
        tT = int(t_tile)
        assert tT % 24 == 0 or tT == T
        T_pad = ((T + tT - 1) // tT) * tT
    if T_pad > T:
        xk = jnp.pad(xk, ((0, 0), (0, T_pad - T), (0, 0)))
    n_t = T_pad // tT
    assert tT % 3 == 0
    assert n_t == 1 or tT % 24 == 0

    CH = 24 if tT % 24 == 0 else tT                  # in-kernel chunk row-count
    n_chunks = tT // CH
    assert n_chunks == 1 or H <= CH, "window too large for 24-row chunked taps"
    assert n_t == 1 or H <= tT, "halo must fit inside one previous tile"

    # Phase-blended planes over one CH-row period (tiny; DMA'd into VMEM once):
    #   planes[k, r, :] = w_{r%3}[k, :],  planes[W_eff, r, :] = bias_{r%3}[:].
    reps = CH // 3
    planes_w = jnp.tile(jnp.transpose(wT, (1, 0, 2)), (1, reps, 1))   # (W_eff, CH, Df)
    plane_b = jnp.tile(bK, (reps, 1))[None]                           # (1, CH, Df)
    planes = jnp.concatenate([planes_w, plane_b], axis=0)             # (W_eff+1, CH, Df)

    kernel = functools.partial(_conv_phase_kernel, CH=CH, n_chunks=n_chunks,
                               save_halo=(n_t > 1))

    out = pl.pallas_call(
        kernel,
        out_shape=jax.ShapeDtypeStruct((Bf, T_pad, Df), x.dtype),
        grid_spec=pltpu.PrefetchScalarGridSpec(
            num_scalar_prefetch=0,
            grid=(Bf, n_t),
            in_specs=[
                pl.BlockSpec((pl.Squeezed(), tT, Df), lambda b, t: (b, t, 0)),
                pl.BlockSpec((W_eff + 1, CH, Df), lambda b, t: (0, 0, 0)),
            ],
            out_specs=pl.BlockSpec((pl.Squeezed(), tT, Df), lambda b, t: (b, t, 0)),
            scratch_shapes=[
                pltpu.VMEM((H + CH, Df), x.dtype),   # chunk-0 [halo | rows] splice
                pltpu.VMEM((H, Df), x.dtype),        # carried causal halo
            ],
        ),
        # T axis must be sequential ("arbitrary"): the causal halo is carried
        # across consecutive t steps in VMEM scratch. Batch axis is parallel.
        compiler_params=pltpu.CompilerParams(
            dimension_semantics=("parallel", "arbitrary"),
            vmem_limit_bytes=vmem_limit,
        ),
    )(xk, planes)

    if T_pad > T:
        out = out[:, :T, :]
    if G > 1:
        out = out.reshape(Bf, T, G, D).transpose(0, 2, 1, 3).reshape(B, T, D)
    return out


def _reference_forward(x, weights, biases, window_size):
    """Pure-JAX reference mirroring the PyTorch forward exactly."""
    B, T, D = x.shape
    W = window_size
    xp = jnp.pad(x.astype(jnp.float32), ((0, 0), (W - 1, 0), (0, 0)))
    outs = []
    for j in range(3):
        acc = sum(xp[:, k:k + T, :] * weights[j, :, k].astype(jnp.float32)[None, None, :]
                  for k in range(W))
        outs.append(acc + biases[j].astype(jnp.float32)[None, None, :])
    tmod = (jnp.arange(T) % 3)[None, :, None]
    out = jnp.where(tmod == 0, outs[0], jnp.where(tmod == 1, outs[1], outs[2]))
    return out.astype(x.dtype)


if __name__ == "__main__":
    key = jax.random.PRNGKey(0)

    def make_case(k, B, T, D, W, dtype=jnp.float32):
        kx, kw, kb = jax.random.split(k, 3)
        bound = (1.0 / W) ** 0.5
        x = jax.random.normal(kx, (B, T, D), dtype=jnp.float32).astype(dtype)
        w = jax.random.uniform(kw, (3, D, W), minval=-bound, maxval=bound, dtype=jnp.float32)
        b = jax.random.uniform(kb, (3, D), minval=-bound, maxval=bound, dtype=jnp.float32)
        return x, w, b

    ks = jax.random.split(key, 4)

    # Case 1: module-like small shape (B=2, T=12, model_dim=32, W=4).
    # Single tile, single chunk (CH = T = 12); no lane fold (keeps Bf >= 2).
    x, w, b = make_case(ks[0], 2, 12, 32, 4)
    out = jax.block_until_ready(convolution_forward(x, w, b, 4))
    ref = _reference_forward(x, w, b, 4)
    assert out.shape == x.shape
    assert jnp.allclose(out, ref, atol=1e-5, rtol=1e-5), "case 1 mismatch vs reference"

    # Case 2: multi-tile carried causal halo + in-kernel chunk loop
    # (T=96, t_tile=48 -> 2 tiles x 2 chunks), lane-dense D=128, odd window.
    x, w, b = make_case(ks[1], 2, 96, 128, 5)
    out = jax.block_until_ready(convolution_forward(x, w, b, 5, t_tile=48))
    ref = _reference_forward(x, w, b, 5)
    assert jnp.allclose(out, ref, atol=1e-5, rtol=1e-5), "case 2 mismatch vs reference"

    # Case 3: T=60 is not a multiple of the 24-row tile -> padded to 72 at the
    # end of time and the padded tail dropped; 3 tiles exercise the halo carry.
    x, w, b = make_case(ks[2], 2, 60, 128, 3)
    out = jax.block_until_ready(convolution_forward(x, w, b, 3, t_tile=24))
    ref = _reference_forward(x, w, b, 3)
    assert out.shape == x.shape
    assert jnp.allclose(out, ref, atol=1e-5, rtol=1e-5), "case 3 mismatch vs reference"

    # Case 4: bf16 I/O fast path + lane-fold path (D=16 -> G=2, Bf=2, Df=32).
    x, w, b = make_case(ks[3], 4, 48, 16, 4, dtype=jnp.bfloat16)
    out = jax.block_until_ready(convolution_forward(x, w, b, 4))
    ref = _reference_forward(x, w, b, 4)
    assert out.dtype == jnp.bfloat16 and out.shape == x.shape
    assert jnp.allclose(out.astype(jnp.float32), ref.astype(jnp.float32),
                        atol=2e-2, rtol=2e-2), "case 4 mismatch vs reference"

    print("KERNEL_OK")
</pallas_src>

<mosaic_0001>
module attributes {stable_mosaic.version = 11 : i64} {
  func.func @_conv_phase_kernel(%arg0: i32, %arg1: i32, %arg2: memref<1x12x32xf32, #tpu.memory_space<vmem>>, %arg3: memref<5x12x32xf32, #tpu.memory_space<vmem>>, %arg4: memref<1x12x32xf32, #tpu.memory_space<vmem>>, %arg5: memref<15x32xf32, #tpu.memory_space<vmem>>, %arg6: memref<3x32xf32, #tpu.memory_space<vmem>>) attributes {dimension_semantics = [#tpu.dimension_semantics<parallel>, #tpu.dimension_semantics<arbitrary>], iteration_bounds = array<i64: 2, 1>, scalar_prefetch = 0 : i64, scratch_operands = 2 : i64, tpu.core_type = #tpu.core_type<tc>, window_params = [{transform_indices = @transform_0, window_bounds = array<i64: 1, 12, 32>}, {pipeline_mode = #tpu.pipeline_mode<synchronous>, transform_indices = @transform_1, window_bounds = array<i64: 5, 12, 32>}, {transform_indices = @transform_2, window_bounds = array<i64: 1, 12, 32>}]} {
    %c0 = arith.constant 0 : index
    %c0_0 = arith.constant 0 : index
    %c0_1 = arith.constant 0 : index
    %0 = vector.load %arg3[%c0, %c0_0, %c0_1] : memref<5x12x32xf32, #tpu.memory_space<vmem>>, vector<1x12x32xf32>
    %1 = vector.shape_cast %0 : vector<1x12x32xf32> to vector<12x32xf32>
    %c1 = arith.constant 1 : index
    %c0_2 = arith.constant 0 : index
    %c0_3 = arith.constant 0 : index
    %2 = vector.load %arg3[%c1, %c0_2, %c0_3] : memref<5x12x32xf32, #tpu.memory_space<vmem>>, vector<1x12x32xf32>
    %3 = vector.shape_cast %2 : vector<1x12x32xf32> to vector<12x32xf32>
    %c2 = arith.constant 2 : index
    %c0_4 = arith.constant 0 : index
    %c0_5 = arith.constant 0 : index
    %4 = vector.load %arg3[%c2, %c0_4, %c0_5] : memref<5x12x32xf32, #tpu.memory_space<vmem>>, vector<1x12x32xf32>
    %5 = vector.shape_cast %4 : vector<1x12x32xf32> to vector<12x32xf32>
    %c3 = arith.constant 3 : index
    %c0_6 = arith.constant 0 : index
    %c0_7 = arith.constant 0 : index
    %6 = vector.load %arg3[%c3, %c0_6, %c0_7] : memref<5x12x32xf32, #tpu.memory_space<vmem>>, vector<1x12x32xf32>
    %7 = vector.shape_cast %6 : vector<1x12x32xf32> to vector<12x32xf32>
    %c4 = arith.constant 4 : index
    %c0_8 = arith.constant 0 : index
    %c0_9 = arith.constant 0 : index
    %8 = vector.load %arg3[%c4, %c0_8, %c0_9] : memref<5x12x32xf32, #tpu.memory_space<vmem>>, vector<1x12x32xf32>
    %9 = vector.shape_cast %8 : vector<1x12x32xf32> to vector<12x32xf32>
    %c0_i32 = arith.constant 0 : i32
    %10 = arith.cmpi eq, %arg1, %c0_i32 : i32
    %11 = arith.extui %10 : i1 to i32
    %c0_i32_10 = arith.constant 0 : i32
    %12 = arith.cmpi ne, %11, %c0_i32_10 : i32
    scf.if %12 {
      %cst = arith.constant 0.000000e+00 : f32
      %34 = vector.broadcast %cst : f32 to vector<3x32xf32>
      %c0_29 = arith.constant 0 : index
      %c0_30 = arith.constant 0 : index
      %35 = vector.load %arg5[%c0_29, %c0_30] : memref<15x32xf32, #tpu.memory_space<vmem>>, vector<3x32xf32>
      tpu.vector_store %arg5[%c0_29, %c0_30], %34 {strides = array<i32>} : memref<15x32xf32, #tpu.memory_space<vmem>>, vector<3x32xf32>,
    } else {
    }
    %c0_i32_11 = arith.constant 0 : i32
    %13 = arith.cmpi ne, %arg1, %c0_i32_11 : i32
    %14 = arith.extui %13 : i1 to i32
    %c0_i32_12 = arith.constant 0 : i32
    %15 = arith.cmpi ne, %14, %c0_i32_12 : i32
    scf.if %15 {
      %c0_29 = arith.constant 0 : index
      %c0_30 = arith.constant 0 : index
      %34 = vector.load %arg6[%c0_29, %c0_30] : memref<3x32xf32, #tpu.memory_space<vmem>>, vector<3x32xf32>
      %c0_31 = arith.constant 0 : index
      %c0_32 = arith.constant 0 : index
      %35 = vector.load %arg5[%c0_31, %c0_32] : memref<15x32xf32, #tpu.memory_space<vmem>>, vector<3x32xf32>
      tpu.vector_store %arg5[%c0_31, %c0_32], %34 {strides = array<i32>} : memref<15x32xf32, #tpu.memory_space<vmem>>, vector<3x32xf32>,
    } else {
    }
    %c0_13 = arith.constant 0 : index
    %c0_14 = arith.constant 0 : index
    %c0_15 = arith.constant 0 : index
    %16 = vector.load %arg2[%c0_13, %c0_14, %c0_15] : memref<1x12x32xf32, #tpu.memory_space<vmem>>, vector<1x12x32xf32>
    %17 = vector.shape_cast %16 : vector<1x12x32xf32> to vector<12x32xf32>
    %c3_16 = arith.constant 3 : index
    %c0_17 = arith.constant 0 : index
    %18 = vector.load %arg5[%c3_16, %c0_17] : memref<15x32xf32, #tpu.memory_space<vmem>>, vector<12x32xf32>
    tpu.vector_store %arg5[%c3_16, %c0_17], %17 {strides = array<i32>} : memref<15x32xf32, #tpu.memory_space<vmem>>, vector<12x32xf32>,
    %c0_18 = arith.constant 0 : index
    %c0_19 = arith.constant 0 : index
    %19 = vector.load %arg5[%c0_18, %c0_19] : memref<15x32xf32, #tpu.memory_space<vmem>>, vector<12x32xf32>
    %20 = arith.mulf %1, %19 : vector<12x32xf32>
    %21 = arith.addf %9, %20 : vector<12x32xf32>
    %c1_20 = arith.constant 1 : index
    %c0_21 = arith.constant 0 : index
    %22 = vector.load %arg5[%c1_20, %c0_21] : memref<15x32xf32, #tpu.memory_space<vmem>>, vector<12x32xf32>
    %23 = arith.mulf %3, %22 : vector<12x32xf32>
    %24 = arith.addf %21, %23 : vector<12x32xf32>
    %c2_22 = arith.constant 2 : index
    %c0_23 = arith.constant 0 : index
    %25 = vector.load %arg5[%c2_22, %c0_23] : memref<15x32xf32, #tpu.memory_space<vmem>>, vector<12x32xf32>
    %26 = arith.mulf %5, %25 : vector<12x32xf32>
    %27 = arith.addf %24, %26 : vector<12x32xf32>
    %c3_24 = arith.constant 3 : index
    %c0_25 = arith.constant 0 : index
    %28 = vector.load %arg5[%c3_24, %c0_25] : memref<15x32xf32, #tpu.memory_space<vmem>>, vector<12x32xf32>
    %29 = arith.mulf %7, %28 : vector<12x32xf32>
    %30 = arith.addf %27, %29 : vector<12x32xf32>
    %c0_26 = arith.constant 0 : index
    %c0_27 = arith.constant 0 : index
    %c0_28 = arith.constant 0 : index
    %31 = vector.load %arg4[%c0_26, %c0_27, %c0_28] : memref<1x12x32xf32, #tpu.memory_space<vmem>>, vector<1x12x32xf32>
    %32 = vector.shape_cast %31 : vector<1x12x32xf32> to vector<12x32xf32>
    %33 = vector.shape_cast %30 : vector<12x32xf32> to vector<1x12x32xf32>
    tpu.vector_store %arg4[%c0_26, %c0_27, %c0_28], %33 {strides = array<i32>} : memref<1x12x32xf32, #tpu.memory_space<vmem>>, vector<1x12x32xf32>,
    return
  }
  func.func @transform_0(%arg0: i32, %arg1: i32) -> (i32, i32, i32) {
    %c0_i32 = arith.constant 0 : i32
    %c0_i32_0 = arith.constant 0 : i32
    return %arg0, %arg1, %c0_i32 : i32, i32, i32
  }
  func.func @transform_1(%arg0: i32, %arg1: i32) -> (i32, i32, i32) {
    %c0_i32 = arith.constant 0 : i32
    %c0_i32_0 = arith.constant 0 : i32
    %c0_i32_1 = arith.constant 0 : i32
    %c0_i32_2 = arith.constant 0 : i32
    return %c0_i32, %c0_i32_0, %c0_i32_1 : i32, i32, i32
  }
  func.func @transform_2(%arg0: i32, %arg1: i32) -> (i32, i32, i32) {
    %c0_i32 = arith.constant 0 : i32
    %c0_i32_0 = arith.constant 0 : i32
    return %arg0, %arg1, %c0_i32 : i32, i32, i32
  }
}

</mosaic_0001>

<llo_original>
// kernel: tpu_custom_call.1
$region0: #{tpu_custom_call.1}
  #allocation0 [shape = 'u32[]', space=smem, size = 0x4, offset = 0x4, fixed_abs, tag = 'smem constant byte address 0x4 - core index']
  #allocation1 [shape = 'u32[72,128]{1,0:T(1,128)}', space=vmem, size = 0x9000, scoped, tag = 'internal scratch']
  #allocation2 [shape = 'f32[15,32]{1,0:T(8,128)}', space=vmem, size = 0x2000, scoped, tag = 'scratch operand']
  #allocation3 [shape = 'f32[3,32]{1,0:T(4,128)}', space=vmem, size = 0x800, scoped, tag = 'scratch operand']
  %s0 = inlined_call_operand.vmem [shape: f32[2,12,32], index: 0, kind: input, shape index: {}]
  %s1 = inlined_call_operand.hbm [shape: f32[5,12,32], index: 1, kind: input, shape index: {}]
  %s2 = inlined_call_operand.vmem [shape: f32[2,12,32], index: 2, kind: output, shape index: {}]
  %s3 = sld [smem:[#allocation0]]
  $region53: #{tpu_custom_call.1} parent=0
    _
  %s5 = ssub.s32 1, %s3
  %s6 = scalar_select 0, %s5, %s3
  $region1: #{tpu_custom_call.1} parent=0
    #allocation4 [shape = 'u8[40960]{0}', space=vmem, size = 0xa000, scoped, tag = 'input window, operand 1, single buffered']
    #allocation5 [shape = 's32[2]{0}', space=sflag, size = 0x8, scoped, tag = 'scoped memory for tpu_custom_call.1']
    %7 = vsyncpa [#allocation5], 0
    loop: start=0, step=1, limit=4
    $region2: #{tpu_custom_call.1} parent=1 // loop_pre_header
      _
    $region3: #{tpu_custom_call.1} parent=1 // loop_header
      %s9 = sphi 0, %s13
      %p10 = scmp.ge.s32.totalorder %s9, 4
      %s16 = sphi 0, %s28
      %s17 = sphi 0, %s24
      %s18 = sphi 0, %s16
      %s19 = sphi 0, %s17
      %s20 = sphi 0, %s18
      %s21 = sphi 0, %s19
      %s33 = sphi 0, %s35
      %s36 = sphi 0, %s33
      %s37 = sphi 0, %s36
      %s53 = sphi 0, %s37
      %s57 = sphi 0, %s57
      %s59 = sphi 0, %s57
      %s60 = sphi 0, %s59
      %s74 = sphi 0, %s60
      %s82 = sphi 0, %s84
      %s85 = sphi 0, %s82
      %s86 = sphi 0, %s85
      %s102 = sphi 0, %s86
    $region4: #{tpu_custom_call.1} parent=1 // loop_header_branch
      %12 = sbr.rel (%p10) target = $region8
    $region5: #{tpu_custom_call.1} parent=1 // loop_body
      %s14 = ssub.s32 %s9, 1
      %s15 = ssub.s32 %s9, 2
      %s22 = sadd.s32 1, %s17
      %p23 = scmp.ge.s32.totalorder %s22, 1
      %s24 = scalar_select %p23, 0, %s22
      %s25 = sadd.s32 1, %s16
      %s26 = scalar_select %p23, %s25, %s16
      %p27 = scmp.ge.s32.totalorder %s26, 2
      %s28 = scalar_select %p27, 0, %s26
      %s29 = ssub.s32 %s16, %s28
      %s30 = ssub.s32 %s17, %s24
      %s31 = sor.u32 %s29, %s30
      %p32 = scmp.eq.s32.totalorder %s31, 0
      %s34 = sadd.s32 %s33, 1
      %s35 = scalar_select %p32, %s33, %s34
      %p38 = pneg %p32
      %p39 = scmp.eq.s32.totalorder %s9, 1
      %p40 = por %p38, %p39
      %p41 = scmp.ne.s32.totalorder %s33, %s36
      %p42 = scmp.eq.s32.totalorder %s9, 0
      %p43 = por %p41, %p42
      %p44 = scmp.ne.s32.totalorder %s33, %s36
      %p45 = scmp.eq.s32.totalorder %s14, 1
      %p46 = por %p44, %p45
      %p47 = scmp.ne.s32.totalorder %s36, %s37
      %p48 = scmp.eq.s32.totalorder %s14, 0
      %p49 = por %p47, %p48
      %p50 = scmp.ne.s32.totalorder %s36, %s37
      %p51 = scmp.eq.s32.totalorder %s15, 1
      %p52 = por %p50, %p51
      %p54 = scmp.ne.s32.totalorder %s37, %s53
      %p55 = scmp.eq.s32.totalorder %s15, 0
      %p56 = por %p54, %p55
      %s58 = sadd.s32 %s57, 1
      %p61 = scmp.eq.s32.totalorder %s9, 1
      %p62 = scmp.ne.s32.totalorder %s57, %s59
      %p63 = scmp.eq.s32.totalorder %s9, 0
      %p64 = por %p62, %p63
      %p65 = scmp.ne.s32.totalorder %s57, %s59
      %p66 = scmp.eq.s32.totalorder %s14, 1
      %p67 = por %p65, %p66
      %p68 = scmp.ne.s32.totalorder %s59, %s60
      %p69 = scmp.eq.s32.totalorder %s14, 0
      %p70 = por %p68, %p69
      %p71 = scmp.ne.s32.totalorder %s59, %s60
      %p72 = scmp.eq.s32.totalorder %s15, 1
      %p73 = por %p71, %p72
      %p75 = scmp.ne.s32.totalorder %s60, %s74
      %p76 = scmp.eq.s32.totalorder %s15, 0
      %p77 = por %p75, %p76
      %s78 = ssub.s32 %s16, %s28
      %s79 = ssub.s32 %s17, %s24
      %s80 = sor.u32 %s78, %s79
      %p81 = scmp.eq.s32.totalorder %s80, 0
      %s83 = sadd.s32 %s82, 1
      %s84 = scalar_select %p81, %s82, %s83
      %p87 = pneg %p81
      %p88 = scmp.eq.s32.totalorder %s9, 1
      %p89 = por %p87, %p88
      %p90 = scmp.ne.s32.totalorder %s82, %s85
      %p91 = scmp.eq.s32.totalorder %s9, 0
      %p92 = por %p90, %p91
      %p93 = scmp.ne.s32.totalorder %s82, %s85
      %p94 = scmp.eq.s32.totalorder %s14, 1
      %p95 = por %p93, %p94
      %p96 = scmp.ne.s32.totalorder %s85, %s86
      %p97 = scmp.eq.s32.totalorder %s14, 0
      %p98 = por %p96, %p97
      %p99 = scmp.ne.s32.totalorder %s85, %s86
      %p100 = scmp.eq.s32.totalorder %s15, 1
      %p101 = por %p99, %p100
      %p103 = scmp.ne.s32.totalorder %s86, %s102
      %p104 = scmp.eq.s32.totalorder %s15, 0
      %p105 = por %p103, %p104
      %p106 = scmp.le.s32.totalorder 1, %s9
      %p107 = scmp.lt.s32.totalorder %s9, 3
      %p108 = pnand %p106, %p107
      %p109 = pneg %p108
      // Predicated region
      $region9: #{tpu_custom_call.1} parent=5 // pred_check
        _
      $region10: #{tpu_custom_call.1} parent=5 // pred_check_branch
        %111 = sbr.rel (%p108) target = $region12
      $region11: #{tpu_custom_call.1} parent=5 // pred_region
        %s112 = ssub.s32 %s9, 1
        // Predicated region
        $region13: #{tpu_custom_call.1} parent=11 // pred_check
          %p113 = pneg %p70
        $region14: #{tpu_custom_call.1} parent=11 // pred_check_branch
          %115 = sbr.rel (%p113) target = $region16
        $region15: #{tpu_custom_call.1} parent=11 // pred_region
          %117 = vsyncadd [#allocation5], 0
          %s118 = sshll.u32 %s1, 4
          %s119 = int_to_ptr.hbm [resolvable:$true] %s118
          %s120 = sshll.u32 [#allocation4], 4
          %s121 = int_to_ptr.vmem [resolvable:$true] %s120
          %126 = dma.hbm_to_vmem [thread:$0]  %s119, 1280, %s121, [#allocation5], 128, 128, 8
        $region16: #{tpu_custom_call.1} parent=11 // pred_fallthru
          _
      $region12: #{tpu_custom_call.1} parent=5 // pred_fallthru
        _
      %p127 = scmp.lt.s32.totalorder %s9, 2
      // Predicated region
      $region17: #{tpu_custom_call.1} parent=5 // pred_check
        %p128 = pneg %p127
      $region18: #{tpu_custom_call.1} parent=5 // pred_check_branch
        %130 = sbr.rel (%p128) target = $region20
      $region19: #{tpu_custom_call.1} parent=5 // pred_region
        // Predicated region
        $region21: #{tpu_custom_call.1} parent=19 // pred_check
          %p131 = pneg %p43
        $region22: #{tpu_custom_call.1} parent=19 // pred_check_branch
          %133 = sbr.rel (%p131) target = $region24
        $region23: #{tpu_custom_call.1} parent=19 // pred_region
          %s134 = smul.u32 2, %s17
          %p135 = scmp.lt.s32.totalorder %s16, 1
          %s136 = scalar_select %p135, %s16, 1
          %p137 = scmp.lt.s32.totalorder %s134, 1
          %s138 = scalar_select %p137, %s134, 1
          %s139 = smul.addr %s136, 2
          %s140 = sadd.s32 %s138, %s139
          %s141 = smul.addr %s140, 8
          %s142 = scalar_lea.vmem %s0, %s141
          %s143 = smul.u32 2, %s17
        $region24: #{tpu_custom_call.1} parent=19 // pred_fallthru
          _
      $region20: #{tpu_custom_call.1} parent=5 // pred_fallthru
        _
      %p144 = scmp.le.s32.totalorder 1, %s9
      %p145 = scmp.lt.s32.totalorder %s9, 3
      %p146 = pnand %p144, %p145
      %p147 = pneg %p146
      // Predicated region
      $region25: #{tpu_custom_call.1} parent=5 // pred_check
        _
      $region26: #{tpu_custom_call.1} parent=5 // pred_check_branch
        %149 = sbr.rel (%p146) target = $region28
      $region27: #{tpu_custom_call.1} parent=5 // pred_region
        %s150 = ssub.s32 %s9, 1
        // Predicated region
        $region29: #{tpu_custom_call.1} parent=27 // pred_check
          %p151 = pneg %p70
        $region30: #{tpu_custom_call.1} parent=27 // pred_check_branch
          %153 = sbr.rel (%p151) target = $region32
        $region31: #{tpu_custom_call.1} parent=27 // pred_region
          %155 = dma.done [#allocation5], 1280
        $region32: #{tpu_custom_call.1} parent=27 // pred_fallthru
          _
        %s156 = smul.u32 2, %s19
        %p157 = scmp.lt.s32.totalorder %s18, 1
        %s158 = scalar_select %p157, %s18, 1
        %p159 = scmp.lt.s32.totalorder %s156, 1
        %s160 = scalar_select %p159, %s156, 1
        %s161 = smul.addr %s158, 2
        %s162 = sadd.s32 %s160, %s161
        %s163 = smul.addr %s162, 8
        %s164 = scalar_lea.vmem %s0, %s163
        %p165 = pneg %p49
        %p166 = pneg %p46
        %p167 = pneg %p70
        %p168 = pneg %p67
        %p169 = pneg %p98
        %p170 = pneg %p95
        %s171 = smul.u32 2, %s19
        %p172 = scmp.lt.s32.totalorder %s18, 1
        %s173 = scalar_select %p172, %s18, 1
        %p174 = scmp.lt.s32.totalorder %s171, 1
        %s175 = scalar_select %p174, %s171, 1
        %s176 = smul.addr %s173, 2
        %s177 = sadd.s32 %s175, %s176
        %s178 = smul.addr %s177, 8
        %s179 = scalar_lea.vmem %s2, %s178
        %s180 = smul.u32 2, %s19
        %p181 = scmp.lt.s32.totalorder %s18, 1
        %s182 = scalar_select %p181, %s18, 1
        %p183 = scmp.lt.s32.totalorder %s180, 1
        %s184 = scalar_select %p183, %s180, 1
        %s185 = smul.addr %s182, 2
        %s186 = sadd.s32 %s184, %s185
        %s187 = smul.addr %s186, 8
        %s188 = scalar_lea.vmem %s0, %s187
        %s189 = smul.u32 2, %s19
        %s190 = smul.u32 2, %s19
        %p191 = scmp.lt.s32.totalorder %s18, 1
        %s192 = scalar_select %p191, %s18, 1
        %p193 = scmp.lt.s32.totalorder %s190, 1
        %s194 = scalar_select %p193, %s190, 1
        %s195 = smul.addr %s192, 2
        %s196 = sadd.s32 %s194, %s195
        %s197 = smul.addr %s196, 8
        %s198 = scalar_lea.vmem %s2, %s197
        %s199 = smul.u32 2, %s19
        %v200 = vld [vmem:[#allocation4] sm:$0xff]
        %v201 = vld [vmem:[#allocation4 + $0x8] sm:$0xf]
        %s202 = scalar_lea.vmem [#allocation4], 16
        %v203 = vld [vmem:[%s202] sm:$0xff]
        %v204 = vld [vmem:[%s202 + $0x8] sm:$0xf]
        %s205 = scalar_lea.vmem [#allocation4], 32
        %v206 = vld [vmem:[%s205] sm:$0xff]
        %v207 = vld [vmem:[%s205 + $0x8] sm:$0xf]
        %s208 = scalar_lea.vmem [#allocation4], 48
        %v209 = vld [vmem:[%s208] sm:$0xff]
        %v210 = vld [vmem:[%s208 + $0x8] sm:$0xf]
        %s211 = scalar_lea.vmem [#allocation4], 64
        %v212 = vld [vmem:[%s211] sm:$0xff]
        %v213 = vld [vmem:[%s211 + $0x8] sm:$0xf]
        %p214 = scmp.eq.s32.totalorder %s19, 0
        // Predicated region
        $region33: #{tpu_custom_call.1} parent=27 // pred_check
          %p215 = pneg %p214
        $region34: #{tpu_custom_call.1} parent=27 // pred_check_branch
          %217 = sbr.rel (%p215) target = $region36
        $region35: #{tpu_custom_call.1} parent=27 // pred_region
          %vm218 = vcmask 256000
          %219 = vst.msk [vmem:[#allocation2] sm:$0x7] %vm218, 0.0
        $region36: #{tpu_custom_call.1} parent=27 // pred_fallthru
          _
        %p220 = scmp.ne.s32.totalorder %s19, 0
        // Predicated region
        $region37: #{tpu_custom_call.1} parent=27 // pred_check
          %p221 = pneg %p220
        $region38: #{tpu_custom_call.1} parent=27 // pred_check_branch
          %223 = sbr.rel (%p221) target = $region40
        $region39: #{tpu_custom_call.1} parent=27 // pred_region
          %v224 = vld [vmem:[#allocation3] sm:$0x7]
          %vm225 = vcmask 256000
          %226 = vst.msk [vmem:[#allocation2] sm:$0x7] %vm225, %v224
        $region40: #{tpu_custom_call.1} parent=27 // pred_fallthru
          _
        %v227 = vld [vmem:[%s188] sm:$0xff]
        %v228 = vld [vmem:[%s188 + $0x8] sm:$0xf]
        %vm229 = vcmask 261120
        %230 = vst.msk [vmem:[#allocation2 + $0x3] sm:$0xff] %vm229, %v227
        %vm231 = vcmask 257024
        %232 = vst.msk [vmem:[#allocation2 + $0xb] sm:$0xf] %vm231, %v228
        %v233 = vld [vmem:[#allocation2] sm:$0xff]
        %v234 = vld [vmem:[#allocation2 + $0x8] sm:$0xf]
        %v235 = vmul.f32 %v200, %v233
        %v236 = vmul.f32 %v201, %v234
        %v237 = vadd.f32 %v212, %v235
        %v238 = vadd.f32 %v213, %v236
        %v239 = vld [vmem:[#allocation2 + $0x1] sm:$0xff]
        %v240 = vld [vmem:[#allocation2 + $0x9] sm:$0xf]
        %v241 = vmul.f32 %v203, %v239
        %v242 = vmul.f32 %v204, %v240
        %v243 = vadd.f32 %v237, %v241
        %v244 = vadd.f32 %v238, %v242
        %v245 = vld [vmem:[#allocation2 + $0x2] sm:$0xff]
        %v246 = vld [vmem:[#allocation2 + $0xa] sm:$0xf]
        %v247 = vmul.f32 %v206, %v245
        %v248 = vmul.f32 %v207, %v246
        %v249 = vadd.f32 %v243, %v247
        %v250 = vadd.f32 %v244, %v248
        %v251 = vld [vmem:[#allocation2 + $0x3] sm:$0xff]
        %v252 = vld [vmem:[#allocation2 + $0xb] sm:$0xf]
        %v253 = vmul.f32 %v209, %v251
        %v254 = vmul.f32 %v210, %v252
        %v255 = vadd.f32 %v249, %v253
        %v256 = vadd.f32 %v250, %v254
        %257 = vst.msk [vmem:[%s198] sm:$0xff] %vm229, %v255
        %258 = vst.msk [vmem:[%s198 + $0x8] sm:$0xf] %vm231, %v256
        %s259 = smul.u32 2, %s19
        %p260 = scmp.lt.s32.totalorder %s18, 1
        %s261 = scalar_select %p260, %s18, 1
        %p262 = scmp.lt.s32.totalorder %s259, 1
        %s263 = scalar_select %p262, %s259, 1
        %s264 = smul.addr %s261, 2
        %s265 = sadd.s32 %s263, %s264
        %s266 = smul.addr %s265, 8
        %s267 = scalar_lea.vmem %s2, %s266
        // Predicated region
        $region41: #{tpu_custom_call.1} parent=27 // pred_check
          %p268 = pneg %p95
        $region42: #{tpu_custom_call.1} parent=27 // pred_check_branch
          %270 = sbr.rel (%p268) target = $region44
        $region43: #{tpu_custom_call.1} parent=27 // pred_region
          %s271 = smul.u32 2, %s19
        $region44: #{tpu_custom_call.1} parent=27 // pred_fallthru
          _
      $region28: #{tpu_custom_call.1} parent=5 // pred_fallthru
        _
      %p272 = scmp.le.s32.totalorder 2, %s9
      // Predicated region
      $region45: #{tpu_custom_call.1} parent=5 // pred_check
        %p273 = pneg %p272
      $region46: #{tpu_custom_call.1} parent=5 // pred_check_branch
        %275 = sbr.rel (%p273) target = $region48
      $region47: #{tpu_custom_call.1} parent=5 // pred_region
        %s276 = ssub.s32 %s9, 2
        // Predicated region
        $region49: #{tpu_custom_call.1} parent=47 // pred_check
          %p277 = pneg %p101
        $region50: #{tpu_custom_call.1} parent=47 // pred_check_branch
          %279 = sbr.rel (%p277) target = $region52
        $region51: #{tpu_custom_call.1} parent=47 // pred_region
          %s280 = smul.u32 2, %s21
          %p281 = scmp.lt.s32.totalorder %s20, 1
          %s282 = scalar_select %p281, %s20, 1
          %p283 = scmp.lt.s32.totalorder %s280, 1
          %s284 = scalar_select %p283, %s280, 1
          %s285 = smul.addr %s282, 2
          %s286 = sadd.s32 %s284, %s285
          %s287 = smul.addr %s286, 8
          %s288 = scalar_lea.vmem %s2, %s287
        $region52: #{tpu_custom_call.1} parent=47 // pred_fallthru
          _
      $region48: #{tpu_custom_call.1} parent=5 // pred_fallthru
        _
    $region6: #{tpu_custom_call.1} parent=1 // loop_footer
      %s13 = sadd.s32 1, %s9
    $region7: #{tpu_custom_call.1} parent=1 // loop_footer_branch
      %8 = sbr.rel target = $region3
    $region8: #{tpu_custom_call.1} parent=1 // loop_exit
      _
    %289 = vsyncpa [#allocation5], 1
    %s290 = scalar_lea.sflag [#allocation5], 1
    %291 = vsyncpa %s290, 1

</llo_original>
